<compile_context>
chip_gen: v5e
topology: v5e:2x2
jax: 0.10.0
libtpu: 0.0.40
codegen_flags: <defaults>
</compile_context>

<pallas_src>
import math

import jax
import jax.numpy as jnp
from jax.experimental import pallas as pl
from jax.experimental.pallas import tpu as pltpu


# ---------------------------------------------------------------------------
# Kernel: pure broadcast-add of the two precomputed tables, then store.
#   a_ref: (tile_a, 1, C)   per-agent term, lane-tiled fold times
#   t_ref: (1, Tf, C)       per-timestep term, T folded into lanes as (Tf, C)
#   o_ref: (tile_b, tile_a, Tf, C)
# ---------------------------------------------------------------------------
def _pos_embed_kernel(a_ref, t_ref, o_ref):
    s = (a_ref[...] + t_ref[...]).astype(o_ref.dtype)        # (tile_a, Tf, C)
    o_ref[...] = jnp.broadcast_to(s[None], o_ref.shape)      # broadcast over batch tile


# ---------------------------------------------------------------------------
# Tiling helpers
# ---------------------------------------------------------------------------
def _divisors(n):
    return sorted({d for i in range(1, int(math.isqrt(n)) + 1) if n % i == 0
                   for d in (i, n // i)})


def _choose_fold(D, T, target_lanes=512):
    """Fold `fold` consecutive timesteps into lanes: lane width C = D*fold.

    Smallest fold making C a multiple of 128 (unmasked vst); widen while the
    sublane count T//fold stays a multiple of 8 (full vreg sublanes)."""
    need = 128 // math.gcd(D, 128)
    fold = need if T % need == 0 else 1     # fallback: masked lanes, still correct
    while (D * fold < target_lanes and T % (2 * fold) == 0
           and (T // (2 * fold)) % 8 == 0):
        fold *= 2
    return fold


def _choose_tiles(B, A, slab_bytes, budget):
    """(tile_a, tile_b) as divisors of A / B, block <= budget, >= 2 grid steps."""
    divs_a, divs_b = _divisors(A), _divisors(B)
    tile_a = max([d for d in divs_a if d * slab_bytes <= budget] or [1])
    tile_b = max([d for d in divs_b if d * tile_a * slab_bytes <= budget] or [1])
    if (A // tile_a) * (B // tile_b) < 2:     # give v7x's second TensorCore work
        if B >= 2:
            tile_b = max(d for d in divs_b if d <= B // 2)
        elif A >= 2:
            tile_a = max(d for d in divs_a if d <= A // 2)
    return tile_a, tile_b


# ---------------------------------------------------------------------------
# Wrapper
# ---------------------------------------------------------------------------
def position_embedding_sine(x, *, num_pos_feats=64, temperature=10000.0,
                            normalize=False, scale=None, out_dtype=jnp.float32):
    """x: (B, A, T, C) — only its shape is consumed. Returns (B, A, T, num_pos_feats)."""
    if scale is not None and normalize is False:
        raise ValueError('normalize should be True if scale is passed')
    if scale is None:
        scale = 2 * math.pi

    B, A, T, Cx = x.shape
    D = int(num_pos_feats)
    assert D % 2 == 0, "num_pos_feats must be even"
    assert Cx in (1, D), "last dim of x must broadcast against num_pos_feats"

    eps = 1e-6
    a_scale = float(scale) / (A + eps) if normalize else 1.0
    t_scale = float(scale) / (T + eps) if normalize else 1.0

    # --- tiny separable tables, computed once in plain JAX (A*D + T*D sin/cos) ---
    j = jnp.arange(D, dtype=jnp.float32)
    dim_t = jnp.float32(temperature) ** (2.0 * jnp.floor(j / 2.0) / D)
    odd = (jnp.arange(D) % 2 == 1)[None, :]

    def _table(n, s):
        v = ((jnp.arange(n, dtype=jnp.float32) + 1.0) * s)[:, None] / dim_t[None, :]
        return jnp.where(odd, jnp.cos(v), jnp.sin(v)).astype(jnp.float32)

    table_a = _table(A, a_scale)          # (A, D): f_a(a, j)
    table_t = _table(T, t_scale)          # (T, D): f_t(t, j)

    # --- lane-dense layout: fold `fold` timesteps into lanes -> (B, A, Tf, C) ---
    fold = _choose_fold(D, T)
    Tf, C = T // fold, D * fold
    a_tab = jnp.tile(table_a, (1, fold)).reshape(A, 1, C)    # a-term, lane-tiled
    t_tab = table_t.reshape(1, Tf, C)                        # t-term, folded

    esize = jnp.dtype(out_dtype).itemsize
    slab_bytes = Tf * C * esize                              # one (b,a) output slab
    tile_a, tile_b = _choose_tiles(B, A, slab_bytes, budget=4 * 1024 * 1024)
    grid = (A // tile_a, B // tile_b)   # b innermost: a_tab block stays resident

    out_block_bytes = tile_b * tile_a * slab_bytes
    vmem_need = 2 * out_block_bytes + 2 * tile_a * C * 4 + 2 * Tf * C * 4 + (2 << 20)
    vmem_limit = int(max(32 * 1024 * 1024, vmem_need))

    out4 = pl.pallas_call(
        _pos_embed_kernel,
        out_shape=jax.ShapeDtypeStruct((B, A, Tf, C), out_dtype),
        grid_spec=pltpu.PrefetchScalarGridSpec(
            num_scalar_prefetch=0,
            grid=grid,
            in_specs=[
                pl.BlockSpec((tile_a, 1, C), lambda ai, bi: (ai, 0, 0)),
                pl.BlockSpec((1, Tf, C), lambda ai, bi: (0, 0, 0)),
            ],
            out_specs=pl.BlockSpec((tile_b, tile_a, Tf, C),
                                   lambda ai, bi: (bi, ai, 0, 0)),
        ),
        compiler_params=pltpu.CompilerParams(
            dimension_semantics=("parallel", "parallel"),
            vmem_limit_bytes=vmem_limit,
        ),
        cost_estimate=pl.CostEstimate(
            flops=B * A * T * D,                   # one add per output element
            transcendentals=0,
            bytes_accessed=B * A * T * D * esize + A * C * 4 + T * D * 4,
        ),
    )(a_tab, t_tab)

    # (B, A, Tf, C) row-major is bit-identical to (B, A, T, D) -> free reshape.
    return out4.reshape(B, A, T, D)


# ---------------------------------------------------------------------------
# Plain-JAX reference (mirrors the PyTorch module exactly).
# ---------------------------------------------------------------------------
def _reference(x, num_pos_feats, temperature=10000.0, normalize=False, scale=None):
    if scale is None:
        scale = 2 * math.pi
    ones = jnp.ones(x.shape, jnp.float32)
    a_embed = jnp.cumsum(ones, axis=1)
    t_embed = jnp.cumsum(ones, axis=2)
    if normalize:
        eps = 1e-6
        a_embed = a_embed / (a_embed[:, -1:, :, :] + eps) * scale
        t_embed = t_embed / (t_embed[:, :, -1:, :] + eps) * scale
    dim = jnp.arange(num_pos_feats, dtype=jnp.float32)
    dim = jnp.floor(dim / 2)
    dim = temperature ** (2 * dim / num_pos_feats)
    pos_t = t_embed / dim
    pos_a = a_embed / dim
    B, A, T = pos_t.shape[:3]
    pos_t = jnp.stack((jnp.sin(pos_t[..., 0::2]), jnp.cos(pos_t[..., 1::2])),
                      axis=4).reshape(B, A, T, -1)
    pos_a = jnp.stack((jnp.sin(pos_a[..., 0::2]), jnp.cos(pos_a[..., 1::2])),
                      axis=4).reshape(B, A, T, -1)
    return pos_a + pos_t


if __name__ == "__main__":
    # (batch, agents, time, num_pos_feats) — values of x are unused (shape only)
    B, A, T, D = 2, 8, 16, 32
    key = jax.random.PRNGKey(0)
    x = jax.random.normal(key, (B, A, T, D), dtype=jnp.float32)

    # default config (normalize=False)
    y = jax.block_until_ready(position_embedding_sine(x, num_pos_feats=D))
    y_ref = _reference(x, num_pos_feats=D)
    assert y.shape == (B, A, T, D)
    assert float(jnp.max(jnp.abs(y - y_ref))) < 1e-4

    # normalized variant
    y_n = jax.block_until_ready(
        position_embedding_sine(x, num_pos_feats=D, normalize=True))
    y_n_ref = _reference(x, num_pos_feats=D, normalize=True)
    assert float(jnp.max(jnp.abs(y_n - y_n_ref))) < 1e-4

    # second shape: D=64 exercises the fold=2 (128-lane, 8-sublane) path
    x2 = jnp.zeros((2, 4, 16, 64), jnp.float32)
    y2 = jax.block_until_ready(position_embedding_sine(x2, num_pos_feats=64))
    y2_ref = _reference(x2, num_pos_feats=64)
    assert float(jnp.max(jnp.abs(y2 - y2_ref))) < 1e-4

    print("KERNEL_OK")
</pallas_src>

<mosaic_0001>
module attributes {stable_mosaic.version = 11 : i64} {
  func.func @_pos_embed_kernel(%arg0: i32, %arg1: i32, %arg2: memref<8x1x128xf32, #tpu.memory_space<vmem>>, %arg3: memref<1x4x128xf32, #tpu.memory_space<vmem>>, %arg4: memref<1x8x4x128xf32, #tpu.memory_space<vmem>>) attributes {dimension_semantics = [#tpu.dimension_semantics<parallel>, #tpu.dimension_semantics<parallel>], iteration_bounds = array<i64: 1, 2>, scalar_prefetch = 0 : i64, scratch_operands = 0 : i64, tpu.core_type = #tpu.core_type<tc>, window_params = [{transform_indices = @transform_0, window_bounds = array<i64: 8, 1, 128>}, {pipeline_mode = #tpu.pipeline_mode<synchronous>, transform_indices = @transform_1, window_bounds = array<i64: 1, 4, 128>}, {transform_indices = @transform_2, window_bounds = array<i64: 1, 8, 4, 128>}]} {
    %c0 = arith.constant 0 : index
    %c0_0 = arith.constant 0 : index
    %c0_1 = arith.constant 0 : index
    %0 = vector.load %arg2[%c0, %c0_0, %c0_1] : memref<8x1x128xf32, #tpu.memory_space<vmem>>, vector<8x1x128xf32>
    %c0_2 = arith.constant 0 : index
    %c0_3 = arith.constant 0 : index
    %c0_4 = arith.constant 0 : index
    %1 = vector.load %arg3[%c0_2, %c0_3, %c0_4] : memref<1x4x128xf32, #tpu.memory_space<vmem>>, vector<1x4x128xf32>
    %2 = vector.broadcast %0 : vector<8x1x128xf32> to vector<8x4x128xf32>
    %3 = vector.broadcast %1 : vector<1x4x128xf32> to vector<8x4x128xf32>
    %4 = arith.addf %2, %3 : vector<8x4x128xf32>
    %5 = vector.shape_cast %4 : vector<8x4x128xf32> to vector<1x8x4x128xf32>
    %c0_5 = arith.constant 0 : index
    %c0_6 = arith.constant 0 : index
    %c0_7 = arith.constant 0 : index
    %c0_8 = arith.constant 0 : index
    %6 = vector.load %arg4[%c0_5, %c0_6, %c0_7, %c0_8] : memref<1x8x4x128xf32, #tpu.memory_space<vmem>>, vector<1x8x4x128xf32>
    tpu.vector_store %arg4[%c0_5, %c0_6, %c0_7, %c0_8], %5 {strides = array<i32>} : memref<1x8x4x128xf32, #tpu.memory_space<vmem>>, vector<1x8x4x128xf32>,
    return
  }
  func.func @transform_0(%arg0: i32, %arg1: i32) -> (i32, i32, i32) {
    %c0_i32 = arith.constant 0 : i32
    %c0_i32_0 = arith.constant 0 : i32
    %c0_i32_1 = arith.constant 0 : i32
    return %arg0, %c0_i32, %c0_i32_0 : i32, i32, i32
  }
  func.func @transform_1(%arg0: i32, %arg1: i32) -> (i32, i32, i32) {
    %c0_i32 = arith.constant 0 : i32
    %c0_i32_0 = arith.constant 0 : i32
    %c0_i32_1 = arith.constant 0 : i32
    %c0_i32_2 = arith.constant 0 : i32
    return %c0_i32, %c0_i32_0, %c0_i32_1 : i32, i32, i32
  }
  func.func @transform_2(%arg0: i32, %arg1: i32) -> (i32, i32, i32, i32) {
    %c0_i32 = arith.constant 0 : i32
    %c0_i32_0 = arith.constant 0 : i32
    %c0_i32_1 = arith.constant 0 : i32
    return %arg1, %arg0, %c0_i32, %c0_i32_0 : i32, i32, i32, i32
  }
}

</mosaic_0001>

<llo_original>
// kernel: tpu_custom_call.1
$region0: #{tpu_custom_call.1}
  #allocation0 [shape = 'u32[]', space=smem, size = 0x4, offset = 0x4, fixed_abs, tag = 'smem constant byte address 0x4 - core index']
  #allocation1 [shape = 'u32[72,128]{1,0:T(1,128)}', space=vmem, size = 0x9000, scoped, tag = 'internal scratch']
  %s0 = inlined_call_operand.hbm [shape: f32[8,1,128], index: 0, kind: input, shape index: {}]
  %s1 = inlined_call_operand.hbm [shape: f32[1,4,128], index: 1, kind: input, shape index: {}]
  %s2 = inlined_call_operand.hbm [shape: f32[2,8,4,128], index: 2, kind: output, shape index: {}]
  %s3 = sld [smem:[#allocation0]]
  $region49: #{tpu_custom_call.1} parent=0
    _
  %s5 = ssub.s32 1, %s3
  %s6 = scalar_select 0, %s5, %s3
  $region1: #{tpu_custom_call.1} parent=0
    #allocation2 [shape = 'u8[4096]{0}', space=vmem, size = 0x1000, scoped, tag = 'input window, operand 0, single buffered']
    #allocation3 [shape = 's32[2]{0}', space=sflag, size = 0x8, scoped, tag = 'scoped memory for tpu_custom_call.1']
    #allocation4 [shape = 's32[2]{0}', space=sflag, size = 0x8, scoped, tag = 'scoped memory for tpu_custom_call.1']
    #allocation5 [shape = 'u8[2048]{0}', space=vmem, size = 0x800, scoped, tag = 'input window, operand 1, single buffered']
    #allocation6 [shape = 's32[1]{0}', space=sflag, size = 0x4, scoped, tag = 'scoped memory for tpu_custom_call.1']
    #allocation7 [shape = 'u8[32768]{0}', space=vmem, size = 0x8000, scoped, tag = 'output window, operand 0']
    %7 = vsyncpa [#allocation3], 0
    %8 = vsyncpa [#allocation6], 0
    %9 = vsyncpa [#allocation4], 0
    %s10 = scalar_lea.sflag [#allocation4], 1
    %11 = vsyncpa %s10, 0
    loop: start=0, step=1, limit=4
    $region2: #{tpu_custom_call.1} parent=1 // loop_pre_header
      _
    $region3: #{tpu_custom_call.1} parent=1 // loop_header
      %s13 = sphi 0, %s17
      %p14 = scmp.ge.s32.totalorder %s13, 4
      %s20 = sphi 0, %s32
      %s21 = sphi 0, %s28
      %s22 = sphi 0, %s20
      %s23 = sphi 0, %s21
      %s24 = sphi 0, %s22
      %s25 = sphi 0, %s23
      %s35 = sphi 0, %s37
      %s38 = sphi 0, %s35
      %s39 = sphi 0, %s38
      %s55 = sphi 0, %s39
      %s59 = sphi 0, %s59
      %s61 = sphi 0, %s59
      %s62 = sphi 0, %s61
      %s76 = sphi 0, %s62
      %s84 = sphi 0, %s86
      %s87 = sphi 0, %s84
      %s88 = sphi 0, %s87
      %s104 = sphi 0, %s88
    $region4: #{tpu_custom_call.1} parent=1 // loop_header_branch
      %16 = sbr.rel (%p14) target = $region8
    $region5: #{tpu_custom_call.1} parent=1 // loop_body
      %s18 = ssub.s32 %s13, 1
      %s19 = ssub.s32 %s13, 2
      %s26 = sadd.s32 1, %s21
      %p27 = scmp.ge.s32.totalorder %s26, 2
      %s28 = scalar_select %p27, 0, %s26
      %s29 = sadd.s32 1, %s20
      %s30 = scalar_select %p27, %s29, %s20
      %p31 = scmp.ge.s32.totalorder %s30, 1
      %s32 = scalar_select %p31, 0, %s30
      %s33 = ssub.s32 %s20, %s32
      %p34 = scmp.eq.s32.totalorder %s33, 0
      %s36 = sadd.s32 %s35, 1
      %s37 = scalar_select %p34, %s35, %s36
      %p40 = pneg %p34
      %p41 = scmp.eq.s32.totalorder %s13, 1
      %p42 = por %p40, %p41
      %p43 = scmp.ne.s32.totalorder %s35, %s38
      %p44 = scmp.eq.s32.totalorder %s13, 0
      %p45 = por %p43, %p44
      %p46 = scmp.ne.s32.totalorder %s35, %s38
      %p47 = scmp.eq.s32.totalorder %s18, 1
      %p48 = por %p46, %p47
      %p49 = scmp.ne.s32.totalorder %s38, %s39
      %p50 = scmp.eq.s32.totalorder %s18, 0
      %p51 = por %p49, %p50
      %p52 = scmp.ne.s32.totalorder %s38, %s39
      %p53 = scmp.eq.s32.totalorder %s19, 1
      %p54 = por %p52, %p53
      %p56 = scmp.ne.s32.totalorder %s39, %s55
      %p57 = scmp.eq.s32.totalorder %s19, 0
      %p58 = por %p56, %p57
      %s60 = sadd.s32 %s59, 1
      %p63 = scmp.eq.s32.totalorder %s13, 1
      %p64 = scmp.ne.s32.totalorder %s59, %s61
      %p65 = scmp.eq.s32.totalorder %s13, 0
      %p66 = por %p64, %p65
      %p67 = scmp.ne.s32.totalorder %s59, %s61
      %p68 = scmp.eq.s32.totalorder %s18, 1
      %p69 = por %p67, %p68
      %p70 = scmp.ne.s32.totalorder %s61, %s62
      %p71 = scmp.eq.s32.totalorder %s18, 0
      %p72 = por %p70, %p71
      %p73 = scmp.ne.s32.totalorder %s61, %s62
      %p74 = scmp.eq.s32.totalorder %s19, 1
      %p75 = por %p73, %p74
      %p77 = scmp.ne.s32.totalorder %s62, %s76
      %p78 = scmp.eq.s32.totalorder %s19, 0
      %p79 = por %p77, %p78
      %s80 = ssub.s32 %s21, %s28
      %s81 = ssub.s32 %s20, %s32
      %s82 = sor.u32 %s80, %s81
      %p83 = scmp.eq.s32.totalorder %s82, 0
      %s85 = sadd.s32 %s84, 1
      %s86 = scalar_select %p83, %s84, %s85
      %p89 = pneg %p83
      %p90 = scmp.eq.s32.totalorder %s13, 1
      %p91 = por %p89, %p90
      %p92 = scmp.ne.s32.totalorder %s84, %s87
      %p93 = scmp.eq.s32.totalorder %s13, 0
      %p94 = por %p92, %p93
      %p95 = scmp.ne.s32.totalorder %s84, %s87
      %p96 = scmp.eq.s32.totalorder %s18, 1
      %p97 = por %p95, %p96
      %p98 = scmp.ne.s32.totalorder %s87, %s88
      %p99 = scmp.eq.s32.totalorder %s18, 0
      %p100 = por %p98, %p99
      %p101 = scmp.ne.s32.totalorder %s87, %s88
      %p102 = scmp.eq.s32.totalorder %s19, 1
      %p103 = por %p101, %p102
      %p105 = scmp.ne.s32.totalorder %s88, %s104
      %p106 = scmp.eq.s32.totalorder %s19, 0
      %p107 = por %p105, %p106
      %p108 = scmp.le.s32.totalorder 1, %s13
      %p109 = scmp.lt.s32.totalorder %s13, 3
      %p110 = pnand %p108, %p109
      %p111 = pneg %p110
      // Predicated region
      $region9: #{tpu_custom_call.1} parent=5 // pred_check
        _
      $region10: #{tpu_custom_call.1} parent=5 // pred_check_branch
        %113 = sbr.rel (%p110) target = $region12
      $region11: #{tpu_custom_call.1} parent=5 // pred_region
        %s114 = ssub.s32 %s13, 1
        // Predicated region
        $region13: #{tpu_custom_call.1} parent=11 // pred_check
          %p115 = pneg %p51
        $region14: #{tpu_custom_call.1} parent=11 // pred_check_branch
          %117 = sbr.rel (%p115) target = $region16
        $region15: #{tpu_custom_call.1} parent=11 // pred_region
          %s118 = smul.u32 8, %s22
          %120 = vsyncadd [#allocation3], 0
          %s121 = scalar_lea.hbm %s0, %s118
          %s122 = sshll.u32 %s121, 4
          %s123 = int_to_ptr.hbm [resolvable:$true] %s122
          %s124 = sshll.u32 [#allocation2], 4
          %s125 = int_to_ptr.vmem [resolvable:$true] %s124
          %130 = dma.hbm_to_vmem [thread:$0]  %s123, 128, %s125, [#allocation3], 16, 16, 1
        $region16: #{tpu_custom_call.1} parent=11 // pred_fallthru
          _
        // Predicated region
        $region17: #{tpu_custom_call.1} parent=11 // pred_check
          %p131 = pneg %p72
        $region18: #{tpu_custom_call.1} parent=11 // pred_check_branch
          %133 = sbr.rel (%p131) target = $region20
        $region19: #{tpu_custom_call.1} parent=11 // pred_region
          %135 = vsyncadd [#allocation6], 0
          %s137 = sshll.u32 %s1, 4
          %s138 = int_to_ptr.hbm [resolvable:$true] %s137
          %s139 = sshll.u32 [#allocation5], 4
          %s140 = int_to_ptr.vmem [resolvable:$true] %s139
          %142 = dma.hbm_to_vmem [thread:$0]  %s138, 64, %s140, [#allocation6]
        $region20: #{tpu_custom_call.1} parent=11 // pred_fallthru
          _
      $region12: #{tpu_custom_call.1} parent=5 // pred_fallthru
        _
      %p143 = scmp.lt.s32.totalorder %s13, 2
      // Predicated region
      $region21: #{tpu_custom_call.1} parent=5 // pred_check
        %p144 = pneg %p143
      $region22: #{tpu_custom_call.1} parent=5 // pred_check_branch
        %146 = sbr.rel (%p144) target = $region24
      $region23: #{tpu_custom_call.1} parent=5 // pred_region
        _
      $region24: #{tpu_custom_call.1} parent=5 // pred_fallthru
        _
      %p147 = scmp.le.s32.totalorder 1, %s13
      %p148 = scmp.lt.s32.totalorder %s13, 3
      %p149 = pnand %p147, %p148
      %p150 = pneg %p149
      // Predicated region
      $region25: #{tpu_custom_call.1} parent=5 // pred_check
        _
      $region26: #{tpu_custom_call.1} parent=5 // pred_check_branch
        %152 = sbr.rel (%p149) target = $region28
      $region27: #{tpu_custom_call.1} parent=5 // pred_region
        %s153 = ssub.s32 %s13, 1
        // Predicated region
        $region29: #{tpu_custom_call.1} parent=27 // pred_check
          %p154 = pneg %p51
        $region30: #{tpu_custom_call.1} parent=27 // pred_check_branch
          %156 = sbr.rel (%p154) target = $region32
        $region31: #{tpu_custom_call.1} parent=27 // pred_region
          %158 = dma.done [#allocation3], 128
        $region32: #{tpu_custom_call.1} parent=27 // pred_fallthru
          _
        // Predicated region
        $region33: #{tpu_custom_call.1} parent=27 // pred_check
          %p159 = pneg %p72
        $region34: #{tpu_custom_call.1} parent=27 // pred_check_branch
          %161 = sbr.rel (%p159) target = $region36
        $region35: #{tpu_custom_call.1} parent=27 // pred_region
          %163 = dma.done [#allocation6], 64
        $region36: #{tpu_custom_call.1} parent=27 // pred_fallthru
          _
        %p164 = pneg %p51
        %p165 = pneg %p48
        %p166 = pneg %p72
        %p167 = pneg %p69
        %p168 = pneg %p100
        %p169 = pneg %p97
        %s170 = sand.u32 %s87, 1
        %s171 = scalar_lea.sflag [#allocation4], %s170
        %s172 = sand.u32 %s87, 1
        %s173 = smul.addr %s172, 32
        %s174 = scalar_lea.vmem [#allocation7], %s173
        %s175 = smul.u32 8, %s22
        %s176 = smul.u32 8, %s22
        %v177 = vld [vmem:[#allocation2] sm:$0x1]
        %v178 = vld [vmem:[#allocation2 + $0x1] sm:$0x1]
        %v179 = vld [vmem:[#allocation2 + $0x2] sm:$0x1]
        %v180 = vld [vmem:[#allocation2 + $0x3] sm:$0x1]
        %v181 = vld [vmem:[#allocation2 + $0x4] sm:$0x1]
        %v182 = vld [vmem:[#allocation2 + $0x5] sm:$0x1]
        %v183 = vld [vmem:[#allocation2 + $0x6] sm:$0x1]
        %v184 = vld [vmem:[#allocation2 + $0x7] sm:$0x1]
        %v185 = vld [vmem:[#allocation5] sm:$0xf]
        %v194 = vperm.slane %v177, 0
        %v195 = vperm.slane %v178, 0
        %v196 = vperm.slane %v179, 0
        %v197 = vperm.slane %v180, 0
        %v198 = vperm.slane %v181, 0
        %v199 = vperm.slane %v182, 0
        %v200 = vperm.slane %v183, 0
        %v201 = vperm.slane %v184, 0
        %v210 = vadd.f32 %v194, %v185
        %v211 = vadd.f32 %v195, %v185
        %v212 = vadd.f32 %v196, %v185
        %v213 = vadd.f32 %v197, %v185
        %v214 = vadd.f32 %v198, %v185
        %v215 = vadd.f32 %v199, %v185
        %v216 = vadd.f32 %v200, %v185
        %v217 = vadd.f32 %v201, %v185
        %218 = vst [vmem:[%s174] sm:$0xf] %v210
        %219 = vst [vmem:[%s174 + $0x4] sm:$0xf] %v211
        %220 = vst [vmem:[%s174 + $0x8] sm:$0xf] %v212
        %221 = vst [vmem:[%s174 + $0xc] sm:$0xf] %v213
        %222 = vst [vmem:[%s174 + $0x10] sm:$0xf] %v214
        %223 = vst [vmem:[%s174 + $0x14] sm:$0xf] %v215
        %224 = vst [vmem:[%s174 + $0x18] sm:$0xf] %v216
        %225 = vst [vmem:[%s174 + $0x1c] sm:$0xf] %v217
        %s226 = sand.u32 %s87, 1
        %s227 = scalar_lea.sflag [#allocation4], %s226
        %s228 = sand.u32 %s87, 1
        %s229 = smul.addr %s228, 32
        %s230 = scalar_lea.vmem [#allocation7], %s229
        // Predicated region
        $region37: #{tpu_custom_call.1} parent=27 // pred_check
          %p231 = pneg %p97
        $region38: #{tpu_custom_call.1} parent=27 // pred_check_branch
          %233 = sbr.rel (%p231) target = $region40
        $region39: #{tpu_custom_call.1} parent=27 // pred_region
          %s234 = smul.u32 8, %s22
          %236 = vsyncadd %s227, 0
          %s237 = smul.addr %s23, 8
          %s238 = sadd.s32 %s234, %s237
          %s239 = smul.addr %s238, 4
          %s240 = scalar_lea.hbm %s2, %s239
          %s241 = sshll.u32 %s230, 4
          %s242 = int_to_ptr.vmem [resolvable:$true] %s241
          %s243 = sshll.u32 %s240, 4
          %s244 = int_to_ptr.hbm [resolvable:$true] %s243
          %249 = dma.vmem_to_hbm [thread:$0]  %s242, 512, %s244, %s227, 64, 64, 4
        $region40: #{tpu_custom_call.1} parent=27 // pred_fallthru
          _
      $region28: #{tpu_custom_call.1} parent=5 // pred_fallthru
        _
      %p250 = scmp.le.s32.totalorder 2, %s13
      // Predicated region
      $region41: #{tpu_custom_call.1} parent=5 // pred_check
        %p251 = pneg %p250
      $region42: #{tpu_custom_call.1} parent=5 // pred_check_branch
        %253 = sbr.rel (%p251) target = $region44
      $region43: #{tpu_custom_call.1} parent=5 // pred_region
        %s254 = ssub.s32 %s13, 2
        // Predicated region
        $region45: #{tpu_custom_call.1} parent=43 // pred_check
          %p255 = pneg %p103
        $region46: #{tpu_custom_call.1} parent=43 // pred_check_branch
          %257 = sbr.rel (%p255) target = $region48
        $region47: #{tpu_custom_call.1} parent=43 // pred_region
          %s258 = sand.u32 %s88, 1
          %s259 = scalar_lea.sflag [#allocation4], %s258
          %s260 = sand.u32 %s88, 1
          %s261 = smul.addr %s260, 32
          %s262 = scalar_lea.vmem [#allocation7], %s261
          %264 = dma.done %s259, 512
        $region48: #{tpu_custom_call.1} parent=43 // pred_fallthru
          _
      $region44: #{tpu_custom_call.1} parent=5 // pred_fallthru
        _
    $region6: #{tpu_custom_call.1} parent=1 // loop_footer
      %s17 = sadd.s32 1, %s13
    $region7: #{tpu_custom_call.1} parent=1 // loop_footer_branch
      %12 = sbr.rel target = $region3
    $region8: #{tpu_custom_call.1} parent=1 // loop_exit
      _
    %265 = vsyncpa [#allocation3], 1
    %s266 = scalar_lea.sflag [#allocation3], 1
    %267 = vsyncpa %s266, 1
    %268 = vsyncpa [#allocation6], 1
    %269 = vsyncpa [#allocation4], 1
    %s270 = scalar_lea.sflag [#allocation4], 1
    %271 = vsyncpa %s270, 1

</llo_original>
